<compile_context>
chip_gen: v7x
topology: tpu7x:2x2x1
jax: 0.10.0
libtpu: 0.0.40
codegen_flags: <defaults>
</compile_context>

<pallas_src>
import functools

import jax
import jax.numpy as jnp
from jax import lax
from jax.experimental import pallas as pl
from jax.experimental.pallas import tpu as pltpu


def _round_up(x, m):
    return (x + m - 1) // m * m


def _sublane_multiple(dtype):
    # f32 -> 8, bf16/f16 -> 16, int8/fp8 -> 32 (packed sublanes).
    return max(8, 32 // jnp.dtype(dtype).itemsize)


def _fixmatch_kernel(ls_ref, lw_ref, out_ref, *, temperature, inv_threshold,
                     n_total, block_rows):
    pid = pl.program_id(0)

    ls = ls_ref[...].astype(jnp.float32)                                  # strong logits [TN, C]
    lw = lw_ref[...].astype(jnp.float32) * jnp.float32(1.0 / temperature) # weak logits / T
    tn, c_dim = ls.shape

    col = lax.broadcasted_iota(jnp.int32, (tn, c_dim), 1)   # class index per lane
    row = lax.broadcasted_iota(jnp.int32, (tn, 1), 0)       # local row index
    # Rows past the true batch size in a ragged last tile hold undefined VMEM.
    row_valid = (pid * block_rows + row) < n_total           # [TN, 1] bool

    # Sanitize padded rows so exp() never runs on undefined data.
    ls = jnp.where(row_valid, ls, 0.0)
    lw = jnp.where(row_valid, lw, 0.0)

    # --- pseudo-label confidence + argmax from weak logits ---
    w_max = jnp.max(lw, axis=-1, keepdims=True)                        # [TN, 1]
    denom = jnp.sum(jnp.exp(lw - w_max), axis=-1, keepdims=True)       # [TN, 1]
    # max softmax prob == 1/denom  =>  conf > threshold  <=>  denom < 1/threshold
    confident = denom < jnp.float32(inv_threshold)                     # [TN, 1] bool
    # argmax with first-occurrence tie-break (matches torch.max / jnp.argmax).
    y_hat = jnp.min(jnp.where(lw == w_max, col, c_dim), axis=-1, keepdims=True)

    # --- cross entropy of strong logits vs pseudo-label (reduction='none') ---
    s_max = jnp.max(ls, axis=-1, keepdims=True)                                  # [TN, 1]
    lse = s_max + jnp.log(jnp.sum(jnp.exp(ls - s_max), axis=-1, keepdims=True))  # [TN, 1]
    s_at_y = jnp.sum(jnp.where(col == y_hat, ls, 0.0), axis=-1, keepdims=True)   # [TN, 1]
    loss = lse - s_at_y                                                          # [TN, 1]

    # --- per-tile partial sums (one select folds confidence + row validity) ---
    keep = row_valid & confident                                  # [TN, 1] bool
    loss_sum = jnp.sum(jnp.where(keep, loss, 0.0))                # scalar
    mask_cnt = jnp.sum(jnp.where(keep, 1.0, 0.0))                 # scalar (for mu)

    # Write the two scalars into a lane-dense, (8,128)-aligned block:
    #   [0, 0] = masked-loss sum, [1, 0] = confident-row count, rest zeros.
    r8 = lax.broadcasted_iota(jnp.int32, (8, 128), 0)
    c8 = lax.broadcasted_iota(jnp.int32, (8, 128), 1)
    out_ref[...] = jnp.where((r8 == 0) & (c8 == 0), loss_sum,
                             jnp.where((r8 == 1) & (c8 == 0), mask_cnt, 0.0))


def fixmatch_cross_entropy(logits_s, logits_w, temperature=0.5, threshold=0.95,
                           block_rows=None, return_mask_mean=False):
    """FixMatch consistency loss.  Supply bf16 logits produced upstream if you
    can (halves HBM traffic; do NOT cast f32->bf16 here)."""
    assert logits_s.shape == logits_w.shape
    assert logits_s.dtype == logits_w.dtype
    n, c = logits_s.shape
    itemsize = jnp.dtype(logits_s.dtype).itemsize
    sub = _sublane_multiple(logits_s.dtype)

    c_pad = _round_up(c, 128)                       # lane-padded class dim in VMEM
    n_tmp = 6                                        # ~f32 [TN,Cpad] intermediates
    dma_row_bytes = c * itemsize                     # HBM bytes per row per input
    vmem_row_bytes = 2 * 2 * c_pad * itemsize + n_tmp * c_pad * 4

    if block_rows is None:
        dma_target = 2 * 1024 * 1024                 # ~2 MiB / input / grid step
        vmem_budget = 24 * 1024 * 1024               # safe under v7x 64 MiB/TC
        rows_dma = dma_target // max(1, dma_row_bytes)
        rows_vmem = vmem_budget // max(1, vmem_row_bytes)
        block_rows = min(rows_dma, rows_vmem)
    block_rows = max(sub, (block_rows // sub) * sub)
    block_rows = min(block_rows, _round_up(n, sub))
    # Keep >= 2 grid tiles when N allows, so both v7x TensorCores get work
    # (harmless on single-TC v5e/v6e).
    block_rows = min(block_rows, max(sub, _round_up(-(-n // 2), sub)))
    num_tiles = pl.cdiv(n, block_rows)

    # VMEM limit derived from the actual padded footprint (+ headroom).
    footprint = (2 * 2 * block_rows * c_pad * itemsize
                 + n_tmp * block_rows * c_pad * 4
                 + 2 * 8 * 128 * 4)
    vmem_limit = int(min(48 * 1024 * 1024,
                         max(16 * 1024 * 1024, footprint + 4 * 1024 * 1024)))

    kernel = functools.partial(
        _fixmatch_kernel,
        temperature=float(temperature),
        inv_threshold=float(1.0 / threshold),
        n_total=n,
        block_rows=block_rows,
    )

    cost = pl.CostEstimate(
        flops=12 * n * c,
        transcendentals=2 * n * c,
        bytes_accessed=2 * n * c * itemsize + num_tiles * 8 * 128 * 4,
    )

    partials = pl.pallas_call(
        kernel,
        grid=(num_tiles,),
        in_specs=[
            pl.BlockSpec((block_rows, c), lambda i: (i, 0)),
            pl.BlockSpec((block_rows, c), lambda i: (i, 0)),
        ],
        out_specs=pl.BlockSpec((8, 128), lambda i: (i, 0)),
        out_shape=jax.ShapeDtypeStruct((num_tiles * 8, 128), jnp.float32),
        compiler_params=pltpu.CompilerParams(
            dimension_semantics=("parallel",),
            vmem_limit_bytes=vmem_limit,
        ),
        cost_estimate=cost,
    )(logits_s, logits_w)

    # Tiny final reduction outside the kernel; divisor is the TRUE batch size.
    parts = partials.reshape(num_tiles, 8, 128)
    loss = jnp.sum(parts[:, 0, 0]) / jnp.float32(n)
    if return_mask_mean:
        # TODO(synk): self.μ (mask mean) is module state in PyTorch, not a
        # forward output; exposed here as an optional second return value.
        mu = jnp.sum(parts[:, 1, 0]) / jnp.float32(n)
        return loss, mu
    return loss


def _reference(logits_s, logits_w, temperature, threshold):
    lw = logits_w.astype(jnp.float32) / temperature
    probs = jax.nn.softmax(lw, axis=-1)
    conf = probs.max(axis=-1)
    y_hat = jnp.argmax(lw, axis=-1)
    mask = (conf > threshold).astype(jnp.float32)
    ls = logits_s.astype(jnp.float32)
    lse = jax.nn.logsumexp(ls, axis=-1)
    loss = lse - jnp.take_along_axis(ls, y_hat[:, None], axis=-1)[:, 0]
    return jnp.mean(loss * mask), jnp.mean(mask)


if __name__ == "__main__":
    key = jax.random.PRNGKey(0)
    k1, k2, k3, k4 = jax.random.split(key, 4)
    temperature, threshold = 0.5, 0.7

    # Test 1: single tile, f32 inputs.
    batch, num_classes = 8, 16
    logits_s = jax.random.normal(k1, (batch, num_classes), dtype=jnp.float32)
    logits_w = 3.0 * jax.random.normal(k2, (batch, num_classes), dtype=jnp.float32)
    out = jax.block_until_ready(
        fixmatch_cross_entropy(logits_s, logits_w, temperature, threshold))
    ref, _ = _reference(logits_s, logits_w, temperature, threshold)
    assert jnp.allclose(out, ref, atol=1e-5, rtol=1e-5), (out, ref)

    # Test 2: multi-tile grid with ragged last tile, bf16 inputs, mask mean.
    ls2 = jax.random.normal(k3, (20, num_classes), dtype=jnp.float32).astype(jnp.bfloat16)
    lw2 = (3.0 * jax.random.normal(k4, (20, num_classes), dtype=jnp.float32)).astype(jnp.bfloat16)
    out2, mu2 = fixmatch_cross_entropy(ls2, lw2, temperature, threshold,
                                       block_rows=16, return_mask_mean=True)
    out2, mu2 = jax.block_until_ready((out2, mu2))
    ref2, ref_mu2 = _reference(ls2.astype(jnp.float32), lw2.astype(jnp.float32),
                               temperature, threshold)
    assert jnp.allclose(out2, ref2, atol=1e-4, rtol=1e-4), (out2, ref2)
    assert jnp.allclose(mu2, ref_mu2, atol=1e-6), (mu2, ref_mu2)

    # Test 3: auto-sized block_rows on a larger batch (exercises the sizing path).
    k5, k6 = jax.random.split(k1)
    ls3 = jax.random.normal(k5, (300, 10), dtype=jnp.float32)
    lw3 = 3.0 * jax.random.normal(k6, (300, 10), dtype=jnp.float32)
    out3 = jax.block_until_ready(
        fixmatch_cross_entropy(ls3, lw3, temperature, threshold))
    ref3, _ = _reference(ls3, lw3, temperature, threshold)
    assert jnp.allclose(out3, ref3, atol=1e-5, rtol=1e-5), (out3, ref3)

    print("KERNEL_OK")
</pallas_src>

<mosaic_0001>
module attributes {stable_mosaic.version = 11 : i64} {
  func.func @_fixmatch_kernel(%arg0: i32, %arg1: memref<8x16xf32, #tpu.memory_space<vmem>>, %arg2: memref<8x16xf32, #tpu.memory_space<vmem>>, %arg3: memref<8x128xf32, #tpu.memory_space<vmem>>) attributes {dimension_semantics = [#tpu.dimension_semantics<parallel>], iteration_bounds = array<i64: 1>, scalar_prefetch = 0 : i64, scratch_operands = 0 : i64, tpu.core_type = #tpu.core_type<tc>, window_params = [{transform_indices = @transform_0, window_bounds = array<i64: 8, 16>}, {transform_indices = @transform_1, window_bounds = array<i64: 8, 16>}, {transform_indices = @transform_2, window_bounds = array<i64: 8, 128>}]} {
    %c0 = arith.constant 0 : index
    %c0_0 = arith.constant 0 : index
    %0 = vector.load %arg1[%c0, %c0_0] : memref<8x16xf32, #tpu.memory_space<vmem>>, vector<8x16xf32>
    %c0_1 = arith.constant 0 : index
    %c0_2 = arith.constant 0 : index
    %1 = vector.load %arg2[%c0_1, %c0_2] : memref<8x16xf32, #tpu.memory_space<vmem>>, vector<8x16xf32>
    %cst = arith.constant 2.000000e+00 : f32
    %2 = vector.broadcast %cst : f32 to vector<8x16xf32>
    %3 = arith.mulf %1, %2 : vector<8x16xf32>
    %4 = tpu.iota {dimensions = array<i32: 1>} : vector<8x16xi32>
    %5 = tpu.iota {dimensions = array<i32: 0>} : vector<8x1xi32>
    %c8_i32 = arith.constant 8 : i32
    %6 = arith.muli %arg0, %c8_i32 : i32
    %7 = vector.broadcast %6 : i32 to vector<8x1xi32>
    %8 = arith.addi %7, %5 : vector<8x1xi32>
    %c8_i32_3 = arith.constant 8 : i32
    %9 = vector.broadcast %c8_i32_3 : i32 to vector<8x1xi32>
    %10 = arith.cmpi slt, %8, %9 : vector<8x1xi32>
    %cst_4 = arith.constant 0.000000e+00 : f32
    %11 = vector.shape_cast %10 : vector<8x1xi1> to vector<8x1xi1>
    %12 = vector.broadcast %11 : vector<8x1xi1> to vector<8x16xi1>
    %13 = vector.broadcast %cst_4 : f32 to vector<8x16xf32>
    %14 = arith.select %12, %0, %13 : vector<8x16xi1>, vector<8x16xf32>
    %cst_5 = arith.constant 0.000000e+00 : f32
    %15 = vector.shape_cast %10 : vector<8x1xi1> to vector<8x1xi1>
    %16 = vector.broadcast %15 : vector<8x1xi1> to vector<8x16xi1>
    %17 = vector.broadcast %cst_5 : f32 to vector<8x16xf32>
    %18 = arith.select %16, %3, %17 : vector<8x16xi1>, vector<8x16xf32>
    %cst_6 = arith.constant dense<0xFF800000> : vector<8xf32>
    %19 = vector.multi_reduction <maximumf>, %18, %cst_6 [1] : vector<8x16xf32> to vector<8xf32>
    %20 = vector.shape_cast %19 : vector<8xf32> to vector<8x1xf32>
    %21 = vector.broadcast %20 : vector<8x1xf32> to vector<8x16xf32>
    %22 = arith.subf %18, %21 : vector<8x16xf32>
    %23 = math.exp %22 : vector<8x16xf32>
    %cst_7 = arith.constant dense<0.000000e+00> : vector<8xf32>
    %24 = vector.multi_reduction <add>, %23, %cst_7 [1] : vector<8x16xf32> to vector<8xf32>
    %25 = vector.shape_cast %24 : vector<8xf32> to vector<8x1xf32>
    %cst_8 = arith.constant 1.42857146 : f32
    %26 = vector.broadcast %cst_8 : f32 to vector<8x1xf32>
    %27 = arith.cmpf olt, %25, %26 : vector<8x1xf32>
    %28 = vector.broadcast %20 : vector<8x1xf32> to vector<8x16xf32>
    %29 = arith.cmpf oeq, %18, %28 : vector<8x16xf32>
    %c16_i32 = arith.constant 16 : i32
    %30 = vector.broadcast %c16_i32 : i32 to vector<8x16xi32>
    %31 = arith.select %29, %4, %30 : vector<8x16xi1>, vector<8x16xi32>
    %cst_9 = arith.constant dense<2147483647> : vector<8xi32>
    %32 = vector.multi_reduction <minsi>, %31, %cst_9 [1] : vector<8x16xi32> to vector<8xi32>
    %33 = vector.shape_cast %32 : vector<8xi32> to vector<8x1xi32>
    %cst_10 = arith.constant dense<0xFF800000> : vector<8xf32>
    %34 = vector.multi_reduction <maximumf>, %14, %cst_10 [1] : vector<8x16xf32> to vector<8xf32>
    %35 = vector.shape_cast %34 : vector<8xf32> to vector<8x1xf32>
    %36 = vector.broadcast %35 : vector<8x1xf32> to vector<8x16xf32>
    %37 = arith.subf %14, %36 : vector<8x16xf32>
    %38 = math.exp %37 : vector<8x16xf32>
    %cst_11 = arith.constant dense<0.000000e+00> : vector<8xf32>
    %39 = vector.multi_reduction <add>, %38, %cst_11 [1] : vector<8x16xf32> to vector<8xf32>
    %40 = vector.shape_cast %39 : vector<8xf32> to vector<8x1xf32>
    %41 = math.log %40 : vector<8x1xf32>
    %42 = arith.addf %35, %41 : vector<8x1xf32>
    %43 = vector.broadcast %33 : vector<8x1xi32> to vector<8x16xi32>
    %44 = arith.cmpi eq, %4, %43 : vector<8x16xi32>
    %cst_12 = arith.constant 0.000000e+00 : f32
    %45 = vector.broadcast %cst_12 : f32 to vector<8x16xf32>
    %46 = arith.select %44, %14, %45 : vector<8x16xi1>, vector<8x16xf32>
    %cst_13 = arith.constant dense<0.000000e+00> : vector<8xf32>
    %47 = vector.multi_reduction <add>, %46, %cst_13 [1] : vector<8x16xf32> to vector<8xf32>
    %48 = vector.shape_cast %47 : vector<8xf32> to vector<8x1xf32>
    %49 = arith.subf %42, %48 : vector<8x1xf32>
    %50 = arith.andi %10, %27 : vector<8x1xi1>
    %cst_14 = arith.constant 0.000000e+00 : f32
    %51 = vector.broadcast %cst_14 : f32 to vector<8x1xf32>
    %52 = arith.select %50, %49, %51 : vector<8x1xi1>, vector<8x1xf32>
    %53 = vector.shape_cast %52 : vector<8x1xf32> to vector<1x8x1xf32>
    %cst_15 = arith.constant dense<0.000000e+00> : vector<1xf32>
    %54 = vector.multi_reduction <add>, %53, %cst_15 [1, 2] : vector<1x8x1xf32> to vector<1xf32>
    %55 = vector.shape_cast %54 : vector<1xf32> to vector<1x1x1xf32>
    %56 = vector.extract %55[0, 0, 0] : f32 from vector<1x1x1xf32>
    %cst_16 = arith.constant 1.000000e+00 : f32
    %cst_17 = arith.constant 0.000000e+00 : f32
    %57 = vector.broadcast %cst_16 : f32 to vector<8x1xf32>
    %58 = vector.broadcast %cst_17 : f32 to vector<8x1xf32>
    %59 = arith.select %50, %57, %58 : vector<8x1xi1>, vector<8x1xf32>
    %60 = vector.shape_cast %59 : vector<8x1xf32> to vector<1x8x1xf32>
    %cst_18 = arith.constant dense<0.000000e+00> : vector<1xf32>
    %61 = vector.multi_reduction <add>, %60, %cst_18 [1, 2] : vector<1x8x1xf32> to vector<1xf32>
    %62 = vector.shape_cast %61 : vector<1xf32> to vector<1x1x1xf32>
    %63 = vector.extract %62[0, 0, 0] : f32 from vector<1x1x1xf32>
    %64 = tpu.iota {dimensions = array<i32: 0>} : vector<8x128xi32>
    %65 = tpu.iota {dimensions = array<i32: 1>} : vector<8x128xi32>
    %c0_i32 = arith.constant 0 : i32
    %66 = vector.broadcast %c0_i32 : i32 to vector<8x128xi32>
    %67 = arith.cmpi eq, %64, %66 : vector<8x128xi32>
    %c0_i32_19 = arith.constant 0 : i32
    %68 = vector.broadcast %c0_i32_19 : i32 to vector<8x128xi32>
    %69 = arith.cmpi eq, %65, %68 : vector<8x128xi32>
    %70 = arith.andi %67, %69 : vector<8x128xi1>
    %c1_i32 = arith.constant 1 : i32
    %71 = vector.broadcast %c1_i32 : i32 to vector<8x128xi32>
    %72 = arith.cmpi eq, %64, %71 : vector<8x128xi32>
    %c0_i32_20 = arith.constant 0 : i32
    %73 = vector.broadcast %c0_i32_20 : i32 to vector<8x128xi32>
    %74 = arith.cmpi eq, %65, %73 : vector<8x128xi32>
    %75 = arith.andi %72, %74 : vector<8x128xi1>
    %cst_21 = arith.constant 0.000000e+00 : f32
    %76 = vector.broadcast %63 : f32 to vector<8x128xf32>
    %77 = vector.broadcast %cst_21 : f32 to vector<8x128xf32>
    %78 = arith.select %75, %76, %77 : vector<8x128xi1>, vector<8x128xf32>
    %79 = vector.broadcast %56 : f32 to vector<8x128xf32>
    %80 = arith.select %70, %79, %78 : vector<8x128xi1>, vector<8x128xf32>
    %c0_22 = arith.constant 0 : index
    %c0_23 = arith.constant 0 : index
    %81 = vector.load %arg3[%c0_22, %c0_23] : memref<8x128xf32, #tpu.memory_space<vmem>>, vector<8x128xf32>
    tpu.vector_store %arg3[%c0_22, %c0_23], %80 {strides = array<i32>} : memref<8x128xf32, #tpu.memory_space<vmem>>, vector<8x128xf32>,
    return
  }
  func.func @transform_0(%arg0: i32) -> (i32, i32) {
    %c0_i32 = arith.constant 0 : i32
    %c0_i32_0 = arith.constant 0 : i32
    return %arg0, %c0_i32 : i32, i32
  }
  func.func @transform_1(%arg0: i32) -> (i32, i32) {
    %c0_i32 = arith.constant 0 : i32
    %c0_i32_0 = arith.constant 0 : i32
    return %arg0, %c0_i32 : i32, i32
  }
  func.func @transform_2(%arg0: i32) -> (i32, i32) {
    %c0_i32 = arith.constant 0 : i32
    %c0_i32_0 = arith.constant 0 : i32
    return %arg0, %c0_i32 : i32, i32
  }
}

</mosaic_0001>

<llo_original>
// kernel: tpu_custom_call.1
$region0: #{tpu_custom_call.1}
  #allocation0 [shape = 'u32[]', space=smem, size = 0x4, offset = 0x4, fixed_abs, tag = 'smem constant byte address 0x4 - core index']
  #allocation1 [shape = 'u32[144,128]{1,0:T(1,128)}', space=vmem, size = 0x12000, scoped, tag = 'internal scratch']
  %s0 = inlined_call_operand.hbm [shape: f32[8,16], index: 0, kind: input, shape index: {}]
  %s1 = inlined_call_operand.hbm [shape: f32[8,16], index: 1, kind: input, shape index: {}]
  %s2 = inlined_call_operand.hbm [shape: f32[8,128], index: 2, kind: output, shape index: {}]
  %s3 = sld [smem:[#allocation0]]
  $region26: #{tpu_custom_call.1} parent=0
    _
  %s5 = ssub.s32 1, %s3
  %s6 = scalar_select 0, %s5, %s3
  $region1: #{tpu_custom_call.1} parent=0
    #allocation2 [shape = 'u8[4096]{0}', space=vmem, size = 0x1000, scoped, tag = 'input window, operand 0, single buffered']
    #allocation3 [shape = 's32[1]{0}', space=sflag, size = 0x4, scoped, tag = 'scoped memory for tpu_custom_call.1']
    #allocation4 [shape = 's32[1]{0}', space=sflag, size = 0x4, scoped, tag = 'scoped memory for tpu_custom_call.1']
    #allocation5 [shape = 'u8[4096]{0}', space=vmem, size = 0x1000, scoped, tag = 'input window, operand 1, single buffered']
    #allocation6 [shape = 's32[1]{0}', space=sflag, size = 0x4, scoped, tag = 'scoped memory for tpu_custom_call.1']
    #allocation7 [shape = 'u8[4096]{0}', space=vmem, size = 0x1000, scoped, tag = 'output window, operand 0, single buffered']
    %7 = vsyncpa [#allocation3], 0
    %8 = vsyncpa [#allocation6], 0
    %9 = vsyncpa [#allocation4], 0
    // Predicated region
    $region2: #{tpu_custom_call.1} parent=1 // pred_check
      _
    $region3: #{tpu_custom_call.1} parent=1 // pred_check_branch
      %11 = sbr.rel (0) target = $region5
    $region4: #{tpu_custom_call.1} parent=1 // pred_region
      %s13 = ssub.s32 128, 128
      %14 = vsyncadd [#allocation3], %s13
      %s16 = sshll.u32 [#allocation2], 4
      %s17 = int_to_ptr.vmem [resolvable:$true] %s16
      %19 = dma.hbm_to_vmem [thread:$0]  %s0, 128, %s17, [#allocation3]
    $region5: #{tpu_custom_call.1} parent=1 // pred_fallthru
      _
    // Predicated region
    $region6: #{tpu_custom_call.1} parent=1 // pred_check
      _
    $region7: #{tpu_custom_call.1} parent=1 // pred_check_branch
      %21 = sbr.rel (0) target = $region9
    $region8: #{tpu_custom_call.1} parent=1 // pred_region
      %s23 = ssub.s32 128, 128
      %24 = vsyncadd [#allocation6], %s23
      %s26 = sshll.u32 [#allocation5], 4
      %s27 = int_to_ptr.vmem [resolvable:$true] %s26
      %29 = dma.hbm_to_vmem [thread:$0]  %s1, 128, %s27, [#allocation6]
    $region9: #{tpu_custom_call.1} parent=1 // pred_fallthru
      _
    // Predicated region
    $region10: #{tpu_custom_call.1} parent=1 // pred_check
      _
    $region11: #{tpu_custom_call.1} parent=1 // pred_check_branch
      %31 = sbr.rel (0) target = $region13
    $region12: #{tpu_custom_call.1} parent=1 // pred_region
      %32 = dma.done [#allocation3], 128
    $region13: #{tpu_custom_call.1} parent=1 // pred_fallthru
      _
    // Predicated region
    $region14: #{tpu_custom_call.1} parent=1 // pred_check
      _
    $region15: #{tpu_custom_call.1} parent=1 // pred_check_branch
      %34 = sbr.rel (0) target = $region17
    $region16: #{tpu_custom_call.1} parent=1 // pred_region
      %35 = dma.done [#allocation6], 128
    $region17: #{tpu_custom_call.1} parent=1 // pred_fallthru
      _
    %v36 = vld [vmem:[#allocation2] sm:$0xff]
    %v37 = vld [vmem:[#allocation5] sm:$0xff]
    %v38 = vmul.f32 %v37, 2.0
    %v39 = vlaneseq
    %v40 = vand.u32 %v39, 127
    %v41 = vlaneseq
    %v42 = vshrl.u32 %v41, 7
    %s43 = smul.u32 0, 8
    %v44 = vstv %s43
    %v45 = vadd.s32 %v44, %v42
    %vm46 = vcmp.lt.s32.totalorder %v45, 8
    %v47 = vsel %vm46, 1, 0
    %vm48 = vcmp.eq.s32.totalorder %v47, 1
    %v49 = vsel %vm48, %v36, 0.0
    %v50 = vsel %vm48, %v38, 0.0
    %vm51 = vcmask 130048
    %v52 = vsel %vm51, %v50, -inf
    %53 = vmax.xlane.f32.xlu0 %v52
    %v54 = vpop.xlane.xlu0 %53
    %v55 = vsub.f32 %v50, %v54
    %v56 = vmul.f32 %v55, 1.442695
    %v57 = vpow.pop %v56
    %v58 = vsel %vm51, %v57, 0.0
    %59 = vadd.xlane.f32.xlu0 %v58
    %v60 = vpop.xlane.xlu0 %59
    %vm61 = vcmp.lt.f32.partialorder %v60, 1.4285715
    %vm62 = vcmp.eq.f32.partialorder %v50, %v54
    %v63 = vsel %vm62, %v40, 16
    %v64 = vsel %vm51, %v63, 2147483647
    %v65 = vand.u32 %v64, 65535
    %v66 = vshra.s32 %v64, 16
    %v67 = vcvt.s32.f32 %v65
    %v68 = vcvt.s32.f32 %v66
    %69 = vmin.xlane.f32.xlu0 %v68
    %v70 = vpop.xlane.xlu0 %69
    %vm71 = vcmp.eq.f32.partialorder %v68, %v70
    %v72 = vsel %vm71, %v67, inf
    %73 = vmin.xlane.f32.xlu0 %v72
    %v74 = vpop.xlane.xlu0 %73
    %v75 = vcvt.f32.s32 %v74
    %v76 = vcvt.f32.s32 %v70
    %v77 = vshll.u32 %v76, 16
    %v78 = vadd.s32 %v77, %v75
    %v79 = vsel %vm51, %v49, -inf
    %80 = vmax.xlane.f32.xlu0 %v79
    %v81 = vpop.xlane.xlu0 %80
    %v82 = vsub.f32 %v49, %v81
    %v83 = vmul.f32 %v82, 1.442695
    %v84 = vpow.pop %v83
    %v85 = vsel %vm51, %v84, 0.0
    %86 = vadd.xlane.f32.xlu0 %v85
    %v87 = vpop.xlane.xlu0 %86
    %v88 = vlog2.pop %v87
    %v89 = vmul.f32 %v88, 0.6931472
    %v90 = vadd.f32 %v81, %v89
    %vm91 = vcmp.eq.s32.totalorder %v40, %v78
    %v92 = vsel %vm91, %v49, 0.0
    %v93 = vsel %vm51, %v92, 0.0
    %94 = vadd.xlane.f32.xlu0 %v93
    %v95 = vpop.xlane.xlu0 %94
    %v96 = vsub.f32 %v90, %v95
    %vm97 = vmand %vm46, %vm61
    %v98 = vsel %vm97, %v96, 0.0
    %vm99 = vcmask 7168
    %v100 = vsel %vm99, %v98, 0.0
    %101 = vadd.xlane.f32.xlu0 %v100
    %v102 = vpop.xlane.xlu0 %101
    %v103 = vrot.slane %v102, 4
    %v104 = vadd.f32 %v102, %v103
    %v105 = vrot.slane %v104, 2
    %v106 = vadd.f32 %v104, %v105
    %v107 = vrot.slane %v106, 1
    %v108 = vadd.f32 %v106, %v107
    %s109 = vtos %v108
    %v110 = vsel %vm97, 1.0, 0.0
    %v111 = vsel %vm99, %v110, 0.0
    %112 = vadd.xlane.f32.xlu0 %v111
    %v113 = vpop.xlane.xlu0 %112
    %v114 = vrot.slane %v113, 4
    %v115 = vadd.f32 %v113, %v114
    %v116 = vrot.slane %v115, 2
    %v117 = vadd.f32 %v115, %v116
    %v118 = vrot.slane %v117, 1
    %v119 = vadd.f32 %v117, %v118
    %s120 = vtos %v119
    %vm121 = vcmp.eq.s32.totalorder %v42, 0
    %vm122 = vcmp.eq.s32.totalorder %v40, 0
    %vm123 = vmand %vm121, %vm122
    %vm124 = vcmp.eq.s32.totalorder %v42, 1
    %vm125 = vmand %vm124, %vm122
    %v126 = vstv %s120
    %v127 = vsel %vm125, %v126, 0.0
    %v128 = vstv %s109
    %v129 = vsel %vm123, %v128, %v127
    %130 = vst [vmem:[#allocation7] sm:$0xff] %v129
    // Predicated region
    $region18: #{tpu_custom_call.1} parent=1 // pred_check
      _
    $region19: #{tpu_custom_call.1} parent=1 // pred_check_branch
      %132 = sbr.rel (0) target = $region21
    $region20: #{tpu_custom_call.1} parent=1 // pred_region
      %s134 = ssub.s32 128, 128
      %135 = vsyncadd [#allocation4], %s134
      %s137 = sshll.u32 [#allocation7], 4
      %s138 = int_to_ptr.vmem [resolvable:$true] %s137
      %140 = dma.vmem_to_hbm [thread:$0]  %s138, 128, %s2, [#allocation4]
    $region21: #{tpu_custom_call.1} parent=1 // pred_fallthru
      _
    // Predicated region
    $region22: #{tpu_custom_call.1} parent=1 // pred_check
      _
    $region23: #{tpu_custom_call.1} parent=1 // pred_check_branch
      %142 = sbr.rel (0) target = $region25
    $region24: #{tpu_custom_call.1} parent=1 // pred_region
      %143 = dma.done [#allocation4], 128
    $region25: #{tpu_custom_call.1} parent=1 // pred_fallthru
      _
    %144 = vsyncpa [#allocation3], 1
    %145 = vsyncpa [#allocation6], 1
    %146 = vsyncpa [#allocation4], 1

</llo_original>
